<compile_context>
chip_gen: v7x
topology: tpu7x:2x2x1
jax: 0.10.0
libtpu: 0.0.40
codegen_flags: <defaults>
</compile_context>

<pallas_src>
import operator
from collections import OrderedDict
from functools import reduce

import jax
import jax.numpy as jnp
from jax.experimental import pallas as pl
from jax.experimental.pallas import tpu as pltpu


def _prod(shape):
    return int(reduce(operator.mul, shape, 1))


def _round_up(x, m):
    return ((x + m - 1) // m) * m


# ----------------------------- kernel 1: trunk ------------------------------ #
def _trunk_kernel(*refs):
    """refs = (z, W0, b0, ..., W_H, b_H, h_out).  Grid = (net n,).

    h = ReLU(z @ W0 + b0); h = ReLU(h @ Wk + bk); ...   (per net n)
    Weights arrive as bf16 and are upcast to f32 in-register; matmuls
    accumulate in f32.  Weights are stored (in, out) so h @ W matches
    PyTorch's x @ W.T with W stored (out, in).
    """
    z_ref, h_out_ref = refs[0], refs[-1]
    wb = refs[1:-1]
    h = z_ref[...].astype(jnp.float32)
    for i in range(len(wb) // 2):
        w = wb[2 * i][...].astype(jnp.float32)
        b = wb[2 * i + 1][...]
        h = jnp.maximum(
            jnp.dot(h, w, preferred_element_type=jnp.float32) + b, 0.0)
    h_out_ref[...] = h


def trunk_forward(z_pad, w_stacks, b_stacks):
    """z_pad (b_pad, in) f32; stacked bf16 trunk weights -> H (N, b_pad, hid) f32."""
    N = w_stacks[0].shape[0]
    b_pad, in_f = z_pad.shape
    hid = w_stacks[-1].shape[-1]

    in_specs = [pl.BlockSpec((b_pad, in_f), lambda n: (0, 0))]
    operands = [z_pad]
    for w, b in zip(w_stacks, b_stacks):
        _, din, dout = w.shape
        in_specs.append(pl.BlockSpec((None, din, dout), lambda n: (n, 0, 0)))
        in_specs.append(pl.BlockSpec((None, 1, dout), lambda n: (n, 0, 0)))
        operands += [w, b]

    return pl.pallas_call(
        _trunk_kernel,
        grid=(N,),
        in_specs=in_specs,
        out_specs=pl.BlockSpec((None, b_pad, hid), lambda n: (n, 0, 0)),
        out_shape=jax.ShapeDtypeStruct((N, b_pad, hid), jnp.float32),
        compiler_params=pltpu.CompilerParams(dimension_semantics=("parallel",)),
    )(*operands)


# -------------------------- kernel 2: last layers --------------------------- #
def _last_layer_kernel(net_id_ref, h_ref, w_ref, b_ref, out_ref):
    """Flat grid over the valid (net, output-tile) pairs only.

    out[:, t*tn:(t+1)*tn] = H[net_id[t]] @ W_cat[:, tile t] + b_cat[:, tile t]
    Every step writes a disjoint output tile -> fully "parallel" grid.
    """
    del net_id_ref  # consumed by the index_maps only
    w = w_ref[...].astype(jnp.float32)
    out_ref[...] = (
        jnp.dot(h_ref[...], w, preferred_element_type=jnp.float32) + b_ref[...])


def last_layer_forward(h_all, w_cat, b_cat, net_ids, tn):
    N, b_pad, hid = h_all.shape
    total_pad = w_cat.shape[1]
    n_tiles = total_pad // tn

    grid_spec = pltpu.PrefetchScalarGridSpec(
        num_scalar_prefetch=1,
        grid=(n_tiles,),
        in_specs=[
            # Same block index for consecutive tiles of one net -> Pallas skips
            # the H re-DMA inside a net.
            pl.BlockSpec((None, b_pad, hid), lambda t, nid: (nid[t], 0, 0)),
            # TODO(synk): pipeline_mode=pl.Buffered(3) on this spec is a
            # possible few-% win at net boundaries (re-check VMEM on v7x).
            pl.BlockSpec((hid, tn), lambda t, nid: (0, t)),
            pl.BlockSpec((1, tn), lambda t, nid: (0, t)),
        ],
        out_specs=pl.BlockSpec((b_pad, tn), lambda t, nid: (0, t)),
    )
    return pl.pallas_call(
        _last_layer_kernel,
        grid_spec=grid_spec,
        out_shape=jax.ShapeDtypeStruct((b_pad, total_pad), jnp.float32),
        compiler_params=pltpu.CompilerParams(dimension_semantics=("parallel",)),
    )(net_ids, h_all, w_cat, b_cat)


# --------------------------- HyperNetwork wrapper ---------------------------- #
class HyperNetworkPallas:
    """Pallas/JAX re-implementation of meta_modules.HyperNetwork (linear=False).

    For every named parameter of the hypo module it builds an FCBlock:
        Linear(in, hid) -> ReLU -> [Linear(hid, hid) -> ReLU] * num_hidden
        -> Linear(hid, prod(param_shape))
    and in forward returns OrderedDict{name: net(z).reshape((-1,) + shape)}.
    All nets share two pallas_calls: one for the trunks, one for all last
    layers over a flattened, prefetch-indexed tile grid.
    """

    def __init__(self, hyper_in_features, hyper_hidden_layers,
                 hyper_hidden_features, hypo_param_shapes, key):
        self.names = list(hypo_param_shapes.keys())
        self.param_shapes = [tuple(s) for s in hypo_param_shapes.values()]
        self.out_dims = [_prod(s) for s in self.param_shapes]

        in_f = hyper_in_features
        hid = hyper_hidden_features
        num_hidden = hyper_hidden_layers
        dims_hidden = [in_f] + [hid] * (num_hidden + 1)
        self.hid = hid

        # ----- output tile width (lane-dense, few & big, VMEM-safe) ----- #
        max_out = max(self.out_dims)
        max_pad = _round_up(max_out, 128)
        if max_pad <= 256:
            tn = max_pad
        else:
            tn = min(1024, _round_up(max_out, 256))     # multiple of 256, no 384
            budget = 8 << 20                            # << v5e 16MiB scoped default
            # double-buffered bf16 W tile + f32 bias tile + f32 out tile (b_pad~8)
            while tn > 256 and 2 * (hid * tn * 2 + tn * 4 + 8 * tn * 4) > budget:
                tn -= 256
        self.tn = tn

        # ----- per-net column layout in the concatenated last-layer slab ----- #
        self.widths = [_round_up(od, tn) for od in self.out_dims]
        self.col_offsets = [0]
        for w in self.widths[:-1]:
            self.col_offsets.append(self.col_offsets[-1] + w)
        self.total_pad = sum(self.widths)

        net_ids = []
        for i, w in enumerate(self.widths):
            net_ids += [i] * (w // tn)
        self.net_ids = jnp.asarray(net_ids, jnp.int32)

        # --------------------- parameter initialisation --------------------- #
        self.nets = []                          # bf16-roundtripped f32 (for ref check)
        w_hidden_stacks = [[] for _ in range(num_hidden + 1)]
        b_hidden_stacks = [[] for _ in range(num_hidden + 1)]
        w_cat = jnp.zeros((hid, self.total_pad), jnp.float32)
        b_cat = jnp.zeros((1, self.total_pad), jnp.float32)

        for net_i, out_f in enumerate(self.out_dims):
            weights, biases = [], []
            # hidden trunk layers (kaiming_normal fan_in / relu, zero bias)
            for li in range(num_hidden + 1):
                key, wkey = jax.random.split(key)
                fan_in = dims_hidden[li]
                std = (2.0 / fan_in) ** 0.5
                w = std * jax.random.normal(
                    wkey, (dims_hidden[li], dims_hidden[li + 1]), jnp.float32)
                w = w.astype(jnp.bfloat16)               # HBM storage dtype
                b = jnp.zeros((1, dims_hidden[li + 1]), jnp.float32)
                weights.append(w.astype(jnp.float32))    # ref uses same rounding
                biases.append(b)
                w_hidden_stacks[li].append(w)
                b_hidden_stacks[li].append(b)
            # last layer: hyper_weight_init / hyper_bias_init (kaiming/100, bias 0)
            key, wkey = jax.random.split(key)
            std = (2.0 / hid) ** 0.5
            w = (std * jax.random.normal(wkey, (hid, out_f), jnp.float32)) / 100.0
            w = w.astype(jnp.bfloat16)
            b = jnp.zeros((1, out_f), jnp.float32)
            weights.append(w.astype(jnp.float32))
            biases.append(b)
            self.nets.append((weights, biases))

            off = self.col_offsets[net_i]
            w_cat = w_cat.at[:, off:off + out_f].set(w.astype(jnp.float32))
            b_cat = b_cat.at[:, off:off + out_f].set(b)

        self.w_stacks = [jnp.stack(ws) for ws in w_hidden_stacks]   # bf16 (N,din,dout)
        self.b_stacks = [jnp.stack(bs) for bs in b_hidden_stacks]   # f32  (N,1,dout)
        self.w_cat = w_cat.astype(jnp.bfloat16)                     # (hid, TOTAL_PAD)
        self.b_cat = b_cat                                          # (1, TOTAL_PAD) f32

    def __call__(self, z):
        B = z.shape[0]
        b_pad = _round_up(B, 8)
        z = z.astype(jnp.float32)
        if b_pad != B:
            z = jnp.zeros((b_pad, z.shape[1]), jnp.float32).at[:B].set(z)

        h_all = trunk_forward(z, self.w_stacks, self.b_stacks)       # (N, b_pad, hid)
        slab = last_layer_forward(h_all, self.w_cat, self.b_cat,
                                  self.net_ids, self.tn)             # (b_pad, TOTAL_PAD)

        params = OrderedDict()
        for name, shape, od, off in zip(self.names, self.param_shapes,
                                        self.out_dims, self.col_offsets):
            params[name] = slab[:B, off:off + od].reshape((B,) + shape)
        return params


# Pure-JAX reference (same bf16-rounded weights, f32 math) for a sanity check.
def _mlp_reference(z, weights, biases):
    h = z.astype(jnp.float32)
    n = len(weights)
    for i, (w, b) in enumerate(zip(weights, biases)):
        h = jnp.dot(h, w, precision=jax.lax.Precision.HIGHEST) + b
        if i < n - 1:
            h = jnp.maximum(h, 0.0)
    return h


# ---------------------------------- main ------------------------------------ #
if __name__ == "__main__":
    key = jax.random.PRNGKey(0)

    # Hypo module: a small MLP (only its parameter shapes matter here).
    hypo_param_shapes = OrderedDict([
        ("net.0.weight", (16, 2)),
        ("net.0.bias",   (16,)),
        ("net.1.weight", (3, 16)),
        ("net.1.bias",   (3,)),
    ])

    hyper_in_features = 32
    hyper_hidden_layers = 1
    hyper_hidden_features = 32
    batch = 2

    key, init_key, z_key = jax.random.split(key, 3)
    hyper = HyperNetworkPallas(hyper_in_features, hyper_hidden_layers,
                               hyper_hidden_features, hypo_param_shapes,
                               init_key)

    z = jax.random.normal(z_key, (batch, hyper_in_features), jnp.float32)

    params = hyper(z)
    params = jax.tree_util.tree_map(jax.block_until_ready, params)

    # Check shapes and numerics against a plain-JAX reference.
    ok = True
    for name, shape, (weights, biases) in zip(hyper.names, hyper.param_shapes,
                                              hyper.nets):
        got = params[name]
        assert got.shape == (batch,) + shape, (name, got.shape)
        ref = _mlp_reference(z, weights, biases).reshape((batch,) + shape)
        ok = ok and bool(jnp.allclose(got, ref, atol=1e-5, rtol=1e-4))
    assert ok, "Pallas output mismatch vs JAX reference"

    print("KERNEL_OK")
</pallas_src>

<mosaic_0001>
module attributes {stable_mosaic.version = 11 : i64} {
  func.func @_trunk_kernel(%arg0: i32, %arg1: memref<8x32xf32, #tpu.memory_space<vmem>>, %arg2: memref<1x32x32xbf16, #tpu.memory_space<vmem>>, %arg3: memref<1x1x32xf32, #tpu.memory_space<vmem>>, %arg4: memref<1x32x32xbf16, #tpu.memory_space<vmem>>, %arg5: memref<1x1x32xf32, #tpu.memory_space<vmem>>, %arg6: memref<1x8x32xf32, #tpu.memory_space<vmem>>) attributes {dimension_semantics = [#tpu.dimension_semantics<parallel>], iteration_bounds = array<i64: 4>, scalar_prefetch = 0 : i64, scratch_operands = 0 : i64, tpu.core_type = #tpu.core_type<tc>, window_params = [{pipeline_mode = #tpu.pipeline_mode<synchronous>, transform_indices = @transform_0, window_bounds = array<i64: 8, 32>}, {transform_indices = @transform_1, window_bounds = array<i64: 1, 32, 32>}, {transform_indices = @transform_2, window_bounds = array<i64: 1, 1, 32>}, {transform_indices = @transform_3, window_bounds = array<i64: 1, 32, 32>}, {transform_indices = @transform_4, window_bounds = array<i64: 1, 1, 32>}, {transform_indices = @transform_5, window_bounds = array<i64: 1, 8, 32>}]} {
    %c0 = arith.constant 0 : index
    %c0_0 = arith.constant 0 : index
    %0 = vector.load %arg1[%c0, %c0_0] : memref<8x32xf32, #tpu.memory_space<vmem>>, vector<8x32xf32>
    %c0_1 = arith.constant 0 : index
    %c0_2 = arith.constant 0 : index
    %c0_3 = arith.constant 0 : index
    %1 = vector.load %arg2[%c0_1, %c0_2, %c0_3] : memref<1x32x32xbf16, #tpu.memory_space<vmem>>, vector<1x32x32xbf16>
    %2 = vector.shape_cast %1 : vector<1x32x32xbf16> to vector<32x32xbf16>
    %3 = arith.extf %2 : vector<32x32xbf16> to vector<32x32xf32>
    %c0_4 = arith.constant 0 : index
    %c0_5 = arith.constant 0 : index
    %c0_6 = arith.constant 0 : index
    %4 = vector.load %arg3[%c0_4, %c0_5, %c0_6] : memref<1x1x32xf32, #tpu.memory_space<vmem>>, vector<1x1x32xf32>
    %5 = vector.shape_cast %4 : vector<1x1x32xf32> to vector<1x32xf32>
    %cst = arith.constant dense<0.000000e+00> : vector<8x32xf32>
    %6 = tpu.matmul %0, %3, %cst {dimension_numbers = #tpu.dot_dimension_numbers<[1], [0], [0], [1], [0, 0, 1, 1], [], []>} : vector<8x32xf32>, vector<32x32xf32>, vector<8x32xf32> -> vector<8x32xf32>
    %7 = vector.broadcast %5 : vector<1x32xf32> to vector<8x32xf32>
    %8 = arith.addf %6, %7 : vector<8x32xf32>
    %cst_7 = arith.constant 0.000000e+00 : f32
    %9 = vector.broadcast %cst_7 : f32 to vector<8x32xf32>
    %10 = arith.maximumf %8, %9 : vector<8x32xf32>
    %c0_8 = arith.constant 0 : index
    %c0_9 = arith.constant 0 : index
    %c0_10 = arith.constant 0 : index
    %11 = vector.load %arg4[%c0_8, %c0_9, %c0_10] : memref<1x32x32xbf16, #tpu.memory_space<vmem>>, vector<1x32x32xbf16>
    %12 = vector.shape_cast %11 : vector<1x32x32xbf16> to vector<32x32xbf16>
    %13 = arith.extf %12 : vector<32x32xbf16> to vector<32x32xf32>
    %c0_11 = arith.constant 0 : index
    %c0_12 = arith.constant 0 : index
    %c0_13 = arith.constant 0 : index
    %14 = vector.load %arg5[%c0_11, %c0_12, %c0_13] : memref<1x1x32xf32, #tpu.memory_space<vmem>>, vector<1x1x32xf32>
    %15 = vector.shape_cast %14 : vector<1x1x32xf32> to vector<1x32xf32>
    %cst_14 = arith.constant dense<0.000000e+00> : vector<8x32xf32>
    %16 = tpu.matmul %10, %13, %cst_14 {dimension_numbers = #tpu.dot_dimension_numbers<[1], [0], [0], [1], [0, 0, 1, 1], [], []>} : vector<8x32xf32>, vector<32x32xf32>, vector<8x32xf32> -> vector<8x32xf32>
    %17 = vector.broadcast %15 : vector<1x32xf32> to vector<8x32xf32>
    %18 = arith.addf %16, %17 : vector<8x32xf32>
    %cst_15 = arith.constant 0.000000e+00 : f32
    %19 = vector.broadcast %cst_15 : f32 to vector<8x32xf32>
    %20 = arith.maximumf %18, %19 : vector<8x32xf32>
    %c0_16 = arith.constant 0 : index
    %c0_17 = arith.constant 0 : index
    %c0_18 = arith.constant 0 : index
    %21 = vector.load %arg6[%c0_16, %c0_17, %c0_18] : memref<1x8x32xf32, #tpu.memory_space<vmem>>, vector<1x8x32xf32>
    %22 = vector.shape_cast %21 : vector<1x8x32xf32> to vector<8x32xf32>
    %23 = vector.shape_cast %20 : vector<8x32xf32> to vector<1x8x32xf32>
    tpu.vector_store %arg6[%c0_16, %c0_17, %c0_18], %23 {strides = array<i32>} : memref<1x8x32xf32, #tpu.memory_space<vmem>>, vector<1x8x32xf32>,
    return
  }
  func.func @transform_0(%arg0: i32) -> (i32, i32) {
    %c0_i32 = arith.constant 0 : i32
    %c0_i32_0 = arith.constant 0 : i32
    %c0_i32_1 = arith.constant 0 : i32
    return %c0_i32, %c0_i32_0 : i32, i32
  }
  func.func @transform_1(%arg0: i32) -> (i32, i32, i32) {
    %c0_i32 = arith.constant 0 : i32
    %c0_i32_0 = arith.constant 0 : i32
    %c0_i32_1 = arith.constant 0 : i32
    return %arg0, %c0_i32, %c0_i32_0 : i32, i32, i32
  }
  func.func @transform_2(%arg0: i32) -> (i32, i32, i32) {
    %c0_i32 = arith.constant 0 : i32
    %c0_i32_0 = arith.constant 0 : i32
    %c0_i32_1 = arith.constant 0 : i32
    return %arg0, %c0_i32, %c0_i32_0 : i32, i32, i32
  }
  func.func @transform_3(%arg0: i32) -> (i32, i32, i32) {
    %c0_i32 = arith.constant 0 : i32
    %c0_i32_0 = arith.constant 0 : i32
    %c0_i32_1 = arith.constant 0 : i32
    return %arg0, %c0_i32, %c0_i32_0 : i32, i32, i32
  }
  func.func @transform_4(%arg0: i32) -> (i32, i32, i32) {
    %c0_i32 = arith.constant 0 : i32
    %c0_i32_0 = arith.constant 0 : i32
    %c0_i32_1 = arith.constant 0 : i32
    return %arg0, %c0_i32, %c0_i32_0 : i32, i32, i32
  }
  func.func @transform_5(%arg0: i32) -> (i32, i32, i32) {
    %c0_i32 = arith.constant 0 : i32
    %c0_i32_0 = arith.constant 0 : i32
    %c0_i32_1 = arith.constant 0 : i32
    return %arg0, %c0_i32, %c0_i32_0 : i32, i32, i32
  }
}

</mosaic_0001>

<llo_original>
// kernel: tpu_custom_call.1
$region0: #{tpu_custom_call.1}
  #allocation0 [shape = 'u32[]', space=smem, size = 0x4, offset = 0x4, fixed_abs, tag = 'smem constant byte address 0x4 - core index']
  #allocation1 [shape = 'u32[144,128]{1,0:T(1,128)}', space=vmem, size = 0x12000, scoped, tag = 'internal scratch']
  %s0 = inlined_call_operand.hbm [shape: f32[8,32], index: 0, kind: input, shape index: {}]
  %s1 = inlined_call_operand.hbm [shape: bf16[4,32,32], index: 1, kind: input, shape index: {}]
  %s2 = inlined_call_operand.vmem [shape: f32[4,1,32], index: 2, kind: input, shape index: {}]
  %s3 = inlined_call_operand.hbm [shape: bf16[4,32,32], index: 3, kind: input, shape index: {}]
  %s4 = inlined_call_operand.vmem [shape: f32[4,1,32], index: 4, kind: input, shape index: {}]
  %s5 = inlined_call_operand.hbm [shape: f32[4,8,32], index: 5, kind: output, shape index: {}]
  %s6 = sld [smem:[#allocation0]]
  $region65: #{tpu_custom_call.1} parent=0
    _
  %s8 = ssub.s32 1, %s6
  %s9 = scalar_select 0, %s8, %s6
  $region1: #{tpu_custom_call.1} parent=0
    #allocation2 [shape = 'u8[4096]{0}', space=vmem, size = 0x1000, scoped, tag = 'input window, operand 0, single buffered']
    #allocation3 [shape = 's32[2]{0}', space=sflag, size = 0x8, scoped, tag = 'scoped memory for tpu_custom_call.1']
    #allocation4 [shape = 's32[2]{0}', space=sflag, size = 0x8, scoped, tag = 'scoped memory for tpu_custom_call.1']
    #allocation5 [shape = 'u8[16384]{0}', space=vmem, size = 0x4000, scoped, tag = 'input window, operand 1']
    #allocation6 [shape = 's32[2]{0}', space=sflag, size = 0x8, scoped, tag = 'scoped memory for tpu_custom_call.1']
    #allocation7 [shape = 'u8[16384]{0}', space=vmem, size = 0x4000, scoped, tag = 'input window, operand 3']
    #allocation8 [shape = 'u8[8192]{0}', space=vmem, size = 0x2000, scoped, tag = 'output window, operand 0']
    %10 = vsyncpa [#allocation3], 0
    %11 = vsyncpa [#allocation6], 0
    %s12 = scalar_lea.sflag [#allocation6], 1
    %13 = vsyncpa %s12, 0
    %14 = vsyncpa [#allocation4], 0
    %s15 = scalar_lea.sflag [#allocation4], 1
    %16 = vsyncpa %s15, 0
    loop: start=0, step=1, limit=6
    $region2: #{tpu_custom_call.1} parent=1 // loop_pre_header
      _
    $region3: #{tpu_custom_call.1} parent=1 // loop_header
      %s18 = sphi 0, %s22
      %p19 = scmp.ge.s32.totalorder %s18, 6
      %s26 = sphi 0, %s26
      %s28 = sphi 0, %s26
      %s29 = sphi 0, %s28
      %s43 = sphi 0, %s29
      %s49 = sphi 0, %s51
      %s52 = sphi 0, %s49
      %s53 = sphi 0, %s52
      %s69 = sphi 0, %s53
      %s75 = sphi 0, %s77
      %s78 = sphi 0, %s75
      %s79 = sphi 0, %s78
      %s95 = sphi 0, %s79
      %s101 = sphi 0, %s103
      %s104 = sphi 0, %s101
      %s105 = sphi 0, %s104
      %s121 = sphi 0, %s105
      %s127 = sphi 0, %s129
      %s130 = sphi 0, %s127
      %s131 = sphi 0, %s130
      %s147 = sphi 0, %s131
      %s153 = sphi 0, %s155
      %s156 = sphi 0, %s153
      %s157 = sphi 0, %s156
      %s173 = sphi 0, %s157
    $region4: #{tpu_custom_call.1} parent=1 // loop_header_branch
      %21 = sbr.rel (%p19) target = $region8
    $region5: #{tpu_custom_call.1} parent=1 // loop_body
      %s23 = ssub.s32 %s18, 1
      %s24 = ssub.s32 %s18, 2
      %s25 = sadd.s32 %s18, 1
      %s27 = sadd.s32 %s26, 1
      %p30 = scmp.eq.s32.totalorder %s18, 3
      %p31 = scmp.ne.s32.totalorder %s26, %s28
      %p32 = scmp.eq.s32.totalorder %s18, 0
      %p33 = por %p31, %p32
      %p34 = scmp.ne.s32.totalorder %s26, %s28
      %p35 = scmp.eq.s32.totalorder %s23, 3
      %p36 = por %p34, %p35
      %p37 = scmp.ne.s32.totalorder %s28, %s29
      %p38 = scmp.eq.s32.totalorder %s23, 0
      %p39 = por %p37, %p38
      %p40 = scmp.ne.s32.totalorder %s28, %s29
      %p41 = scmp.eq.s32.totalorder %s24, 3
      %p42 = por %p40, %p41
      %p44 = scmp.ne.s32.totalorder %s29, %s43
      %p45 = scmp.eq.s32.totalorder %s24, 0
      %p46 = por %p44, %p45
      %s47 = ssub.s32 %s18, %s25
      %p48 = scmp.eq.s32.totalorder %s47, 0
      %s50 = sadd.s32 %s49, 1
      %s51 = scalar_select %p48, %s49, %s50
      %p54 = pneg %p48
      %p55 = scmp.eq.s32.totalorder %s18, 3
      %p56 = por %p54, %p55
      %p57 = scmp.ne.s32.totalorder %s49, %s52
      %p58 = scmp.eq.s32.totalorder %s18, 0
      %p59 = por %p57, %p58
      %p60 = scmp.ne.s32.totalorder %s49, %s52
      %p61 = scmp.eq.s32.totalorder %s23, 3
      %p62 = por %p60, %p61
      %p63 = scmp.ne.s32.totalorder %s52, %s53
      %p64 = scmp.eq.s32.totalorder %s23, 0
      %p65 = por %p63, %p64
      %p66 = scmp.ne.s32.totalorder %s52, %s53
      %p67 = scmp.eq.s32.totalorder %s24, 3
      %p68 = por %p66, %p67
      %p70 = scmp.ne.s32.totalorder %s53, %s69
      %p71 = scmp.eq.s32.totalorder %s24, 0
      %p72 = por %p70, %p71
      %s73 = ssub.s32 %s18, %s25
      %p74 = scmp.eq.s32.totalorder %s73, 0
      %s76 = sadd.s32 %s75, 1
      %s77 = scalar_select %p74, %s75, %s76
      %p80 = pneg %p74
      %p81 = scmp.eq.s32.totalorder %s18, 3
      %p82 = por %p80, %p81
      %p83 = scmp.ne.s32.totalorder %s75, %s78
      %p84 = scmp.eq.s32.totalorder %s18, 0
      %p85 = por %p83, %p84
      %p86 = scmp.ne.s32.totalorder %s75, %s78
      %p87 = scmp.eq.s32.totalorder %s23, 3
      %p88 = por %p86, %p87
      %p89 = scmp.ne.s32.totalorder %s78, %s79
      %p90 = scmp.eq.s32.totalorder %s23, 0
      %p91 = por %p89, %p90
      %p92 = scmp.ne.s32.totalorder %s78, %s79
      %p93 = scmp.eq.s32.totalorder %s24, 3
      %p94 = por %p92, %p93
      %p96 = scmp.ne.s32.totalorder %s79, %s95
      %p97 = scmp.eq.s32.totalorder %s24, 0
      %p98 = por %p96, %p97
      %s99 = ssub.s32 %s18, %s25
      %p100 = scmp.eq.s32.totalorder %s99, 0
      %s102 = sadd.s32 %s101, 1
      %s103 = scalar_select %p100, %s101, %s102
      %p106 = pneg %p100
      %p107 = scmp.eq.s32.totalorder %s18, 3
      %p108 = por %p106, %p107
      %p109 = scmp.ne.s32.totalorder %s101, %s104
      %p110 = scmp.eq.s32.totalorder %s18, 0
      %p111 = por %p109, %p110
      %p112 = scmp.ne.s32.totalorder %s101, %s104
      %p113 = scmp.eq.s32.totalorder %s23, 3
      %p114 = por %p112, %p113
      %p115 = scmp.ne.s32.totalorder %s104, %s105
      %p116 = scmp.eq.s32.totalorder %s23, 0
      %p117 = por %p115, %p116
      %p118 = scmp.ne.s32.totalorder %s104, %s105
      %p119 = scmp.eq.s32.totalorder %s24, 3
      %p120 = por %p118, %p119
      %p122 = scmp.ne.s32.totalorder %s105, %s121
      %p123 = scmp.eq.s32.totalorder %s24, 0
      %p124 = por %p122, %p123
      %s125 = ssub.s32 %s18, %s25
      %p126 = scmp.eq.s32.totalorder %s125, 0
      %s128 = sadd.s32 %s127, 1
      %s129 = scalar_select %p126, %s127, %s128
      %p132 = pneg %p126
      %p133 = scmp.eq.s32.totalorder %s18, 3
      %p134 = por %p132, %p133
      %p135 = scmp.ne.s32.totalorder %s127, %s130
      %p136 = scmp.eq.s32.totalorder %s18, 0
      %p137 = por %p135, %p136
      %p138 = scmp.ne.s32.totalorder %s127, %s130
      %p139 = scmp.eq.s32.totalorder %s23, 3
      %p140 = por %p138, %p139
      %p141 = scmp.ne.s32.totalorder %s130, %s131
      %p142 = scmp.eq.s32.totalorder %s23, 0
      %p143 = por %p141, %p142
      %p144 = scmp.ne.s32.totalorder %s130, %s131
      %p145 = scmp.eq.s32.totalorder %s24, 3
      %p146 = por %p144, %p145
      %p148 = scmp.ne.s32.totalorder %s131, %s147
      %p149 = scmp.eq.s32.totalorder %s24, 0
      %p150 = por %p148, %p149
      %s151 = ssub.s32 %s18, %s25
      %p152 = scmp.eq.s32.totalorder %s151, 0
      %s154 = sadd.s32 %s153, 1
      %s155 = scalar_select %p152, %s153, %s154
      %p158 = pneg %p152
      %p159 = scmp.eq.s32.totalorder %s18, 3
      %p160 = por %p158, %p159
      %p161 = scmp.ne.s32.totalorder %s153, %s156
      %p162 = scmp.eq.s32.totalorder %s18, 0
      %p163 = por %p161, %p162
      %p164 = scmp.ne.s32.totalorder %s153, %s156
      %p165 = scmp.eq.s32.totalorder %s23, 3
      %p166 = por %p164, %p165
      %p167 = scmp.ne.s32.totalorder %s156, %s157
      %p168 = scmp.eq.s32.totalorder %s23, 0
      %p169 = por %p167, %p168
      %p170 = scmp.ne.s32.totalorder %s156, %s157
      %p171 = scmp.eq.s32.totalorder %s24, 3
      %p172 = por %p170, %p171
      %p174 = scmp.ne.s32.totalorder %s157, %s173
      %p175 = scmp.eq.s32.totalorder %s24, 0
      %p176 = por %p174, %p175
      %p177 = scmp.le.s32.totalorder 1, %s18
      %p178 = scmp.lt.s32.totalorder %s18, 5
      %p179 = pnand %p177, %p178
      %p180 = pneg %p179
      // Predicated region
      $region9: #{tpu_custom_call.1} parent=5 // pred_check
        _
      $region10: #{tpu_custom_call.1} parent=5 // pred_check_branch
        %182 = sbr.rel (%p179) target = $region12
      $region11: #{tpu_custom_call.1} parent=5 // pred_region
        %s183 = ssub.s32 %s18, 1
        // Predicated region
        $region13: #{tpu_custom_call.1} parent=11 // pred_check
          %p184 = pneg %p39
        $region14: #{tpu_custom_call.1} parent=11 // pred_check_branch
          %186 = sbr.rel (%p184) target = $region16
        $region15: #{tpu_custom_call.1} parent=11 // pred_region
          %s188 = ssub.s32 128, 128
          %189 = vsyncadd [#allocation3], %s188
          %s191 = sshll.u32 [#allocation2], 4
          %s192 = int_to_ptr.vmem [resolvable:$true] %s191
          %194 = dma.hbm_to_vmem [thread:$0]  %s0, 128, %s192, [#allocation3]
        $region16: #{tpu_custom_call.1} parent=11 // pred_fallthru
          _
      $region12: #{tpu_custom_call.1} parent=5 // pred_fallthru
        _
      %p195 = scmp.lt.s32.totalorder %s18, 4
      // Predicated region
      $region17: #{tpu_custom_call.1} parent=5 // pred_check
        %p196 = pneg %p195
      $region18: #{tpu_custom_call.1} parent=5 // pred_check_branch
        %198 = sbr.rel (%p196) target = $region20
      $region19: #{tpu_custom_call.1} parent=5 // pred_region
        // Predicated region
        $region21: #{tpu_custom_call.1} parent=19 // pred_check
          %p199 = pneg %p59
        $region22: #{tpu_custom_call.1} parent=19 // pred_check_branch
          %201 = sbr.rel (%p199) target = $region24
        $region23: #{tpu_custom_call.1} parent=19 // pred_region
          %s202 = sand.u32 %s18, 1
          %s203 = scalar_lea.sflag [#allocation6], %s202
          %s204 = sand.u32 %s49, 1
          %s205 = smul.addr %s204, 16
          %s206 = scalar_lea.vmem [#allocation5], %s205
          %s208 = ssub.s32 256, 256
          %209 = vsyncadd %s203, %s208
          %s210 = smul.addr %s18, 4
          %s211 = smul.addr %s210, 64
          %s212 = scalar_lea.hbm %s1, %s211
          %s213 = sshll.u32 %s206, 4
          %s214 = int_to_ptr.vmem [resolvable:$true] %s213
          %219 = dma.hbm_to_vmem [thread:$0]  %s212, 256, %s214, %s203, 64, 64, 4
        $region24: #{tpu_custom_call.1} parent=19 // pred_fallthru
          _
        // Predicated region
        $region25: #{tpu_custom_call.1} parent=19 // pred_check
          %p220 = pneg %p85
        $region26: #{tpu_custom_call.1} parent=19 // pred_check_branch
          %222 = sbr.rel (%p220) target = $region28
        $region27: #{tpu_custom_call.1} parent=19 // pred_region
          %p223 = scmp.lt.s32.totalorder %s18, 3
          %s224 = scalar_select %p223, %s18, 3
          %s225 = scalar_lea.vmem %s2, %s224
        $region28: #{tpu_custom_call.1} parent=19 // pred_fallthru
          _
        // Predicated region
        $region29: #{tpu_custom_call.1} parent=19 // pred_check
          %p226 = pneg %p111
        $region30: #{tpu_custom_call.1} parent=19 // pred_check_branch
          %228 = sbr.rel (%p226) target = $region32
        $region31: #{tpu_custom_call.1} parent=19 // pred_region
          %s229 = sand.u32 %s18, 1
          %s230 = scalar_lea.sflag [#allocation6], %s229
          %s231 = sand.u32 %s101, 1
          %s232 = smul.addr %s231, 16
          %s233 = scalar_lea.vmem [#allocation7], %s232
          %s235 = ssub.s32 256, 256
          %236 = vsyncadd %s230, %s235
          %s237 = smul.addr %s18, 4
          %s238 = smul.addr %s237, 64
          %s239 = scalar_lea.hbm %s3, %s238
          %s240 = sshll.u32 %s233, 4
          %s241 = int_to_ptr.vmem [resolvable:$true] %s240
          %246 = dma.hbm_to_vmem [thread:$0]  %s239, 256, %s241, %s230, 64, 64, 4
        $region32: #{tpu_custom_call.1} parent=19 // pred_fallthru
          _
        // Predicated region
        $region33: #{tpu_custom_call.1} parent=19 // pred_check
          %p247 = pneg %p137
        $region34: #{tpu_custom_call.1} parent=19 // pred_check_branch
          %249 = sbr.rel (%p247) target = $region36
        $region35: #{tpu_custom_call.1} parent=19 // pred_region
          %p250 = scmp.lt.s32.totalorder %s18, 3
          %s251 = scalar_select %p250, %s18, 3
          %s252 = scalar_lea.vmem %s4, %s251
        $region36: #{tpu_custom_call.1} parent=19 // pred_fallthru
          _
      $region20: #{tpu_custom_call.1} parent=5 // pred_fallthru
        _
      %p253 = scmp.le.s32.totalorder 1, %s18
      %p254 = scmp.lt.s32.totalorder %s18, 5
      %p255 = pnand %p253, %p254
      %p256 = pneg %p255
      // Predicated region
      $region37: #{tpu_custom_call.1} parent=5 // pred_check
        _
      $region38: #{tpu_custom_call.1} parent=5 // pred_check_branch
        %258 = sbr.rel (%p255) target = $region40
      $region39: #{tpu_custom_call.1} parent=5 // pred_region
        %s259 = ssub.s32 %s18, 1
        // Predicated region
        $region41: #{tpu_custom_call.1} parent=39 // pred_check
          %p260 = pneg %p39
        $region42: #{tpu_custom_call.1} parent=39 // pred_check_branch
          %262 = sbr.rel (%p260) target = $region44
        $region43: #{tpu_custom_call.1} parent=39 // pred_region
          %263 = dma.done [#allocation3], 128
        $region44: #{tpu_custom_call.1} parent=39 // pred_fallthru
          _
        %s264 = sand.u32 %s23, 1
        %s265 = scalar_lea.sflag [#allocation6], %s264
        %s266 = sand.u32 %s52, 1
        %s267 = smul.addr %s266, 16
        %s268 = scalar_lea.vmem [#allocation5], %s267
        // Predicated region
        $region45: #{tpu_custom_call.1} parent=39 // pred_check
          %p269 = pneg %p65
        $region46: #{tpu_custom_call.1} parent=39 // pred_check_branch
          %271 = sbr.rel (%p269) target = $region48
        $region47: #{tpu_custom_call.1} parent=39 // pred_region
          %272 = dma.done %s265, 256
        $region48: #{tpu_custom_call.1} parent=39 // pred_fallthru
          _
        %s273 = sand.u32 %s23, 1
        %s274 = scalar_lea.sflag [#allocation6], %s273
        %s275 = sand.u32 %s104, 1
        %s276 = smul.addr %s275, 16
        %s277 = scalar_lea.vmem [#allocation7], %s276
        // Predicated region
        $region49: #{tpu_custom_call.1} parent=39 // pred_check
          %p278 = pneg %p117
        $region50: #{tpu_custom_call.1} parent=39 // pred_check_branch
          %280 = sbr.rel (%p278) target = $region52
        $region51: #{tpu_custom_call.1} parent=39 // pred_region
          %281 = dma.done %s274, 256
        $region52: #{tpu_custom_call.1} parent=39 // pred_fallthru
          _
        %p282 = pneg %p39
        %p283 = pneg %p36
        %s284 = sand.u32 %s23, 1
        %s285 = scalar_lea.sflag [#allocation6], %s284
        %s286 = sand.u32 %s52, 1
        %s287 = smul.addr %s286, 16
        %s288 = scalar_lea.vmem [#allocation5], %s287
        %p289 = pneg %p65
        %p290 = pneg %p62
        %p291 = scmp.lt.s32.totalorder %s23, 3
        %s292 = scalar_select %p291, %s23, 3
        %s293 = scalar_lea.vmem %s2, %s292
        %p294 = pneg %p91
        %p295 = pneg %p88
        %s296 = sand.u32 %s23, 1
        %s297 = scalar_lea.sflag [#allocation6], %s296
        %s298 = sand.u32 %s104, 1
        %s299 = smul.addr %s298, 16
        %s300 = scalar_lea.vmem [#allocation7], %s299
        %p301 = pneg %p117
        %p302 = pneg %p114
        %p303 = scmp.lt.s32.totalorder %s23, 3
        %s304 = scalar_select %p303, %s23, 3
        %s305 = scalar_lea.vmem %s4, %s304
        %p306 = pneg %p143
        %p307 = pneg %p140
        %p308 = pneg %p169
        %p309 = pneg %p166
        %s310 = sand.u32 %s156, 1
        %s311 = scalar_lea.sflag [#allocation4], %s310
        %s312 = sand.u32 %s156, 1
        %s313 = smul.addr %s312, 8
        %s314 = scalar_lea.vmem [#allocation8], %s313
        %p315 = scmp.lt.s32.totalorder %s23, 3
        %s316 = scalar_select %p315, %s23, 3
        %s317 = scalar_lea.vmem %s2, %s316
        %p318 = scmp.lt.s32.totalorder %s23, 3
        %s319 = scalar_select %p318, %s23, 3
        %s320 = scalar_lea.vmem %s4, %s319
        %v321 = vld [vmem:[#allocation2] sm:$0xff]
        %v322 = vld [vmem:[%s268] sm:$0xf]
        %v323 = vld [vmem:[%s268 + $0x4] sm:$0xf]
        %v324 = vld [vmem:[%s268 + $0x8] sm:$0xf]
        %v325 = vld [vmem:[%s268 + $0xc] sm:$0xf]
        %v326 = vunpack.c.l.bf16 %v322
        %v327 = vunpack.c.l.bf16 %v323
        %v328 = vunpack.c.l.bf16 %v324
        %v329 = vunpack.c.l.bf16 %v325
        %v330 = vld [vmem:[%s317] sm:$0x1]
        %v332 = vlaneseq
        %v333 = vshrl.u32 %v332, 7
        %v334 = vsub.s32 0, %v333
        %v335 = vrot.slane %v330, %v334
        %vm337 = vcmask 261120
        %v339 = vsel %vm337, %v321, 0
        %341 = vmatprep.subr.mxu0 0.0
        %342 = vmatpush1.msra.mxu0 %v326
        %343 = vmatprep.subr.mxu0 0.0
        %344 = vmatpush1.msra.mxu0 %v327
        %345 = vmatprep.subr.mxu0 0.0
        %346 = vmatpush1.msra.mxu0 %v328
        %347 = vmatprep.subr.mxu0 0.0
        %348 = vmatpush1.msra.mxu0 %v329
        %349 = vmatprep.subr.mxu0 0.0
        %350 = vmatpush1.msra.mxu0 0.0
        %351 = vmatprep.subr.mxu0 0.0
        %352 = vmatpush1.msra.mxu0 0.0
        %353 = vmatprep.subr.mxu0 0.0
        %354 = vmatpush1.msra.mxu0 0.0
        %355 = vmatprep.subr.mxu0 0.0
        %356 = vmatpush1.msra.mxu0 0.0
        %357 = vmatprep.subr.mxu0 0.0
        %358 = vmatpush1.msra.mxu0 0.0
        %359 = vmatprep.subr.mxu0 0.0
        %360 = vmatpush1.msra.mxu0 0.0
        %361 = vmatprep.subr.mxu0 0.0
        %362 = vmatpush1.msra.mxu0 0.0
        %363 = vmatprep.subr.mxu0 0.0
        %364 = vmatpush1.msra.mxu0 0.0
        %365 = vmatprep.subr.mxu0 0.0
        %366 = vmatpush1.msra.mxu0 0.0
        %367 = vmatprep.subr.mxu0 0.0
        %368 = vmatpush1.msra.mxu0 0.0
        %369 = vmatprep.subr.mxu0 0.0
        %370 = vmatpush1.msra.mxu0 0.0
        %371 = vmatprep.subr.mxu0 0.0
        %372 = vmatpush1.msra.mxu0 0.0
        %373 = vmatprep.subr.mxu0 0.0
        %374 = vmatpush1.msra.mxu0 0.0
        %375 = vmatprep.subr.mxu0 0.0
        %376 = vmatpush1.msra.mxu0 0.0
        %377 = vmatprep.subr.mxu0 0.0
        %378 = vmatpush1.msra.mxu0 0.0
        %379 = vmatprep.subr.mxu0 0.0
        %380 = vmatpush1.msra.mxu0 0.0
        %381 = vmatprep.subr.mxu0 0.0
        %382 = vmatpush1.msra.mxu0 0.0
        %383 = vmatprep.subr.mxu0 0.0
        %384 = vmatpush1.msra.mxu0 0.0
        %385 = vmatprep.subr.mxu0 0.0
        %386 = vmatpush1.msra.mxu0 0.0
        %387 = vmatprep.subr.mxu0 0.0
        %388 = vmatpush1.msra.mxu0 0.0
        %389 = vmatprep.subr.mxu0 0.0
        %390 = vmatpush1.msra.mxu0 0.0
        %391 = vmatprep.subr.mxu0 0.0
        %392 = vmatpush1.msra.mxu0 0.0
        %393 = vmatprep.subr.mxu0 0.0
        %394 = vmatpush1.msra.mxu0 0.0
        %395 = vmatprep.subr.mxu0 0.0
        %396 = vmatpush1.msra.mxu0 0.0
        %397 = vmatprep.subr.mxu0 0.0
        %398 = vmatpush1.msra.mxu0 0.0
        %399 = vmatprep.subr.mxu0 0.0
        %400 = vmatpush1.msra.mxu0 0.0
        %401 = vmatprep.subr.mxu0 0.0
        %402 = vmatpush1.msra.mxu0 0.0
        %403 = vmatprep.subr.mxu0 0.0
        %404 = vmatpush1.msra.mxu0 0.0
        %405 = vmatprep.mubr.f32.mxu0 0.0
        %406 = vmatmul.mubr.f32.gmra.mrb[0].mxu0 %v339
        %v407 = vpop.f32.mrb[0].mxu0
        %v408 = vadd.f32 %v335, %v407
        %v409 = vpop.f32.mrb[0].mxu0
        %410 = vdwg.mxu0
        %v411 = vmax.f32 %v408, 0.0
        %v412 = vld [vmem:[%s277] sm:$0xf]
        %v413 = vld [vmem:[%s277 + $0x4] sm:$0xf]
        %v414 = vld [vmem:[%s277 + $0x8] sm:$0xf]
        %v415 = vld [vmem:[%s277 + $0xc] sm:$0xf]
        %v416 = vunpack.c.l.bf16 %v412
        %v417 = vunpack.c.l.bf16 %v413
        %v418 = vunpack.c.l.bf16 %v414
        %v419 = vunpack.c.l.bf16 %v415
        %v420 = vld [vmem:[%s320] sm:$0x1]
        %v422 = vlaneseq
        %v423 = vshrl.u32 %v422, 7
        %v424 = vsub.s32 0, %v423
        %v425 = vrot.slane %v420, %v424
        %v428 = vsel %vm337, %v411, 0
        %430 = vmatprep.subr.mxu0 0.0
        %431 = vmatpush1.msra.mxu0 %v416
        %432 = vmatprep.subr.mxu0 0.0
        %433 = vmatpush1.msra.mxu0 %v417
        %434 = vmatprep.subr.mxu0 0.0
        %435 = vmatpush1.msra.mxu0 %v418
        %436 = vmatprep.subr.mxu0 0.0
        %437 = vmatpush1.msra.mxu0 %v419
        %438 = vmatprep.subr.mxu0 0.0
        %439 = vmatpush1.msra.mxu0 0.0
        %440 = vmatprep.subr.mxu0 0.0
        %441 = vmatpush1.msra.mxu0 0.0
        %442 = vmatprep.subr.mxu0 0.0
        %443 = vmatpush1.msra.mxu0 0.0
        %444 = vmatprep.subr.mxu0 0.0
        %445 = vmatpush1.msra.mxu0 0.0
        %446 = vmatprep.subr.mxu0 0.0
        %447 = vmatpush1.msra.mxu0 0.0
        %448 = vmatprep.subr.mxu0 0.0
        %449 = vmatpush1.msra.mxu0 0.0
        %450 = vmatprep.subr.mxu0 0.0
        %451 = vmatpush1.msra.mxu0 0.0
        %452 = vmatprep.subr.mxu0 0.0
        %453 = vmatpush1.msra.mxu0 0.0
        %454 = vmatprep.subr.mxu0 0.0
        %455 = vmatpush1.msra.mxu0 0.0
        %456 = vmatprep.subr.mxu0 0.0
        %457 = vmatpush1.msra.mxu0 0.0
        %458 = vmatprep.subr.mxu0 0.0
        %459 = vmatpush1.msra.mxu0 0.0
        %460 = vmatprep.subr.mxu0 0.0
        %461 = vmatpush1.msra.mxu0 0.0
        %462 = vmatprep.subr.mxu0 0.0
        %463 = vmatpush1.msra.mxu0 0.0
        %464 = vmatprep.subr.mxu0 0.0
        %465 = vmatpush1.msra.mxu0 0.0
        %466 = vmatprep.subr.mxu0 0.0
        %467 = vmatpush1.msra.mxu0 0.0
        %468 = vmatprep.subr.mxu0 0.0
        %469 = vmatpush1.msra.mxu0 0.0
        %470 = vmatprep.subr.mxu0 0.0
        %471 = vmatpush1.msra.mxu0 0.0
        %472 = vmatprep.subr.mxu0 0.0
        %473 = vmatpush1.msra.mxu0 0.0
        %474 = vmatprep.subr.mxu0 0.0
        %475 = vmatpush1.msra.mxu0 0.0
        %476 = vmatprep.subr.mxu0 0.0
        %477 = vmatpush1.msra.mxu0 0.0
        %478 = vmatprep.subr.mxu0 0.0
        %479 = vmatpush1.msra.mxu0 0.0
        %480 = vmatprep.subr.mxu0 0.0
        %481 = vmatpush1.msra.mxu0 0.0
        %482 = vmatprep.subr.mxu0 0.0
        %483 = vmatpush1.msra.mxu0 0.0
        %484 = vmatprep.subr.mxu0 0.0
        %485 = vmatpush1.msra.mxu0 0.0
        %486 = vmatprep.subr.mxu0 0.0
        %487 = vmatpush1.msra.mxu0 0.0
        %488 = vmatprep.subr.mxu0 0.0
        %489 = vmatpush1.msra.mxu0 0.0
        %490 = vmatprep.subr.mxu0 0.0
        %491 = vmatpush1.msra.mxu0 0.0
        %492 = vmatprep.subr.mxu0 0.0
        %493 = vmatpush1.msra.mxu0 0.0
        %494 = vmatprep.mubr.f32.mxu0 0.0
        %495 = vmatmul.mubr.f32.gmra.mrb[0].mxu0 %v428
        %v496 = vpop.f32.mrb[0].mxu0
        %v497 = vadd.f32 %v425, %v496
        %v498 = vpop.f32.mrb[0].mxu0
        %499 = vdwg.mxu0
        %v500 = vmax.f32 %v497, 0.0
        %501 = vst.msk [vmem:[%s314] sm:$0xff] %vm337, %v500
        %s502 = sand.u32 %s156, 1
        %s503 = scalar_lea.sflag [#allocation4], %s502
        %s504 = sand.u32 %s156, 1
        %s505 = smul.addr %s504, 8
        %s506 = scalar_lea.vmem [#allocation8], %s505
        // Predicated region
        $region53: #{tpu_custom_call.1} parent=39 // pred_check
          %p507 = pneg %p166
        $region54: #{tpu_custom_call.1} parent=39 // pred_check_branch
          %509 = sbr.rel (%p507) target = $region56
        $region55: #{tpu_custom_call.1} parent=39 // pred_region
          %s511 = ssub.s32 128, 128
          %512 = vsyncadd %s503, %s511
          %s513 = smul.addr %s23, 128
          %s514 = scalar_lea.hbm %s5, %s513
          %s516 = sshll.u32 %s506, 4
          %s517 = int_to_ptr.vmem [resolvable:$true] %s516
          %519 = dma.vmem_to_hbm [thread:$0]  %s517, 128, %s514, %s503
        $region56: #{tpu_custom_call.1} parent=39 // pred_fallthru
          _
      $region40: #{tpu_custom_call.1} parent=5 // pred_fallthru
        _
      %p520 = scmp.le.s32.totalorder 2, %s18
      // Predicated region
      $region57: #{tpu_custom_call.1} parent=5 // pred_check
        %p521 = pneg %p520
      $region58: #{tpu_custom_call.1} parent=5 // pred_check_branch
        %523 = sbr.rel (%p521) target = $region60
      $region59: #{tpu_custom_call.1} parent=5 // pred_region
        %s524 = ssub.s32 %s18, 2
        // Predicated region
        $region61: #{tpu_custom_call.1} parent=59 // pred_check
          %p525 = pneg %p172
        $region62: #{tpu_custom_call.1} parent=59 // pred_check_branch
          %527 = sbr.rel (%p525) target = $region64
        $region63: #{tpu_custom_call.1} parent=59 // pred_region
          %s528 = sand.u32 %s157, 1
          %s529 = scalar_lea.sflag [#allocation4], %s528
          %s530 = sand.u32 %s157, 1
          %s531 = smul.addr %s530, 8
          %s532 = scalar_lea.vmem [#allocation8], %s531
          %533 = dma.done %s529, 128
        $region64: #{tpu_custom_call.1} parent=59 // pred_fallthru
          _
      $region60: #{tpu_custom_call.1} parent=5 // pred_fallthru
        _
    $region6: #{tpu_custom_call.1} parent=1 // loop_footer
      %s22 = sadd.s32 1, %s18
    $region7: #{tpu_custom_call.1} parent=1 // loop_footer_branch
      %17 = sbr.rel target = $region3
    $region8: #{tpu_custom_call.1} parent=1 // loop_exit
      _
    %534 = vsyncpa [#allocation3], 1
    %s535 = scalar_lea.sflag [#allocation3], 1
    %536 = vsyncpa %s535, 1
    %537 = vsyncpa [#allocation6], 1
    %s538 = scalar_lea.sflag [#allocation6], 1
    %539 = vsyncpa %s538, 1
    %540 = vsyncpa [#allocation4], 1
    %s541 = scalar_lea.sflag [#allocation4], 1
    %542 = vsyncpa %s541, 1

</llo_original>
